<compile_context>
chip_gen: v6e
topology: v6e:2x2x1
jax: 0.10.0
libtpu: 0.0.40
codegen_flags: <defaults>
</compile_context>

<pallas_src>
import jax
import jax.numpy as jnp
from jax.experimental import pallas as pl
from jax.experimental.pallas import tpu as pltpu


# ---------------------------------------------------------------------------
# Kernels (elementwise hot path: split + softplus + add; VPU/EUP only).
# ---------------------------------------------------------------------------

def _vec2box_kernel(vec_ref, out_ref):
    """Writes the full (tm, 2D) output block: [z | z + softplus(delta)]."""
    d = vec_ref.shape[-1] // 2
    z = vec_ref[:, :d]
    delta = vec_ref[:, d:].astype(jnp.float32)
    # Numerically stable, branch-free softplus:
    #   softplus(x) = max(x, 0) + log1p(exp(-|x|))
    # (matches torch's threshold-20 softplus to well within 1e-5)
    sp = jnp.maximum(delta, 0.0) + jnp.log1p(jnp.exp(-jnp.abs(delta)))
    out_ref[:, :d] = z
    out_ref[:, d:] = (z.astype(jnp.float32) + sp).astype(out_ref.dtype)


def _vec2box_donate_kernel(vec_ref, zhi_ref):
    """Aliased variant: only the Z half (tm, D) is written back to HBM."""
    d = zhi_ref.shape[-1]
    z = vec_ref[:, :d].astype(jnp.float32)
    delta = vec_ref[:, d:].astype(jnp.float32)
    sp = jnp.maximum(delta, 0.0) + jnp.log1p(jnp.exp(-jnp.abs(delta)))
    zhi_ref[...] = (z + sp).astype(zhi_ref.dtype)


# ---------------------------------------------------------------------------
# Tiling heuristics.
# ---------------------------------------------------------------------------

_SUBLANE_BY_ITEMSIZE = {4: 8, 2: 16, 1: 32}   # f32 / bf16 / int8-fp8 vreg tiles


def _round_up(x: int, m: int) -> int:
    return ((x + m - 1) // m) * m


def _choose_tm(B: int, twoD: int, itemsize: int, sublane: int) -> int:
    """Rows per grid step: ~4 MiB of in+out HBM traffic per block."""
    target_bytes = 4 << 20
    bytes_per_row = 2 * twoD * itemsize                 # read 2D + write 2D
    tm = max(sublane,
             (min(B, max(1, target_bytes // bytes_per_row)) // sublane) * sublane)
    # >= 4 grid steps when the batch allows it: enables real pipelining and
    # gives each of v7x's two TensorCores at least 2 iterations.
    if B >= 4 * sublane:
        tm = min(tm, _round_up(pl.cdiv(B, 4), sublane))
    tm = max(sublane, min(tm, _round_up(B, sublane)))
    # Best effort: even grid count so the two v7x cores stay balanced.
    g = pl.cdiv(B, tm)
    if g > 1 and g % 2 == 1:
        tm_even = max(sublane, _round_up(pl.cdiv(B, g + 1), sublane))
        if pl.cdiv(B, tm_even) % 2 == 0:
            tm = tm_even
    return tm


# ---------------------------------------------------------------------------
# Wrapper.
# ---------------------------------------------------------------------------

def vec2box(vec: jax.Array, *, donate: bool = False) -> jax.Array:
    """vec: (B, 2*D) -> box data (B, 2, D)  ([..,0,:]=z, [..,1,:]=Z).

    donate=True: alias the output onto `vec` and write only the Z half
    (caller should donate `vec` at its jit boundary to realize the ~25%
    HBM-traffic saving; correctness holds either way).
    """
    B, twoD = vec.shape
    assert twoD % 2 == 0, "last dim must be 2*D"
    D = twoD // 2

    itemsize = jnp.dtype(vec.dtype).itemsize
    sublane = _SUBLANE_BY_ITEMSIZE.get(itemsize, 8)
    tm = _choose_tm(B, twoD, itemsize, sublane)
    grid = (pl.cdiv(B, tm),)

    cparams = pltpu.CompilerParams(
        dimension_semantics=("parallel",),
        vmem_limit_bytes=32 << 20,   # ~8 MiB actually used (double-buffered)
    )

    if donate and D % 128 == 0:
        # z half is already in the aliased buffer -> write only lanes [D:2D).
        out_flat = pl.pallas_call(
            _vec2box_donate_kernel,
            out_shape=jax.ShapeDtypeStruct((B, twoD), vec.dtype),
            grid=grid,
            in_specs=[pl.BlockSpec((tm, twoD), lambda i: (i, 0))],
            out_specs=pl.BlockSpec((tm, D), lambda i: (i, 1)),
            input_output_aliases={0: 0},
            compiler_params=cparams,
            cost_estimate=pl.CostEstimate(
                flops=5 * B * D,
                transcendentals=2 * B * D,
                bytes_accessed=(3 * B * twoD * itemsize) // 2,
            ),
        )(vec)
    else:
        out_flat = pl.pallas_call(
            _vec2box_kernel,
            out_shape=jax.ShapeDtypeStruct((B, twoD), vec.dtype),
            grid=grid,
            in_specs=[pl.BlockSpec((tm, twoD), lambda i: (i, 0))],
            out_specs=pl.BlockSpec((tm, twoD), lambda i: (i, 0)),
            compiler_params=cparams,
            cost_estimate=pl.CostEstimate(
                flops=5 * B * D,
                transcendentals=2 * B * D,
                bytes_accessed=2 * B * twoD * itemsize,
            ),
        )(vec)

    # Free contiguous reshape into the BoxTensor data layout (B, 2, D):
    # row = [z_0..z_{D-1}, Z_0..Z_{D-1}]  ->  [:, 0, :] = z, [:, 1, :] = Z.
    return out_flat.reshape(B, 2, D)


if __name__ == "__main__":
    key = jax.random.PRNGKey(0)
    B, D = 16, 128                      # small demo shapes; vec last dim = 2*D
    vec = jax.random.normal(key, (B, 2 * D), dtype=jnp.float32)

    # Pure-JAX reference (min-delta BoxFactory parameterization).
    z_ref = vec[:, :D]
    Z_ref = z_ref + jax.nn.softplus(vec[:, D:])
    ref = jnp.stack([z_ref, Z_ref], axis=-2)

    # Default path.
    box = jax.block_until_ready(vec2box(vec))
    assert box.shape == (B, 2, D)
    assert jnp.allclose(box, ref, atol=1e-5, rtol=1e-5)

    # Aliased (donation-friendly) path: writes only the Z half.
    box_d = jax.block_until_ready(vec2box(vec, donate=True))
    assert box_d.shape == (B, 2, D)
    assert jnp.allclose(box_d, ref, atol=1e-5, rtol=1e-5)

    print("KERNEL_OK")
</pallas_src>

<mosaic_0001>
module attributes {stable_mosaic.version = 11 : i64} {
  func.func @_vec2box_kernel(%arg0: i32, %arg1: memref<16x256xf32, #tpu.memory_space<vmem>>, %arg2: memref<16x256xf32, #tpu.memory_space<vmem>>) attributes {dimension_semantics = [#tpu.dimension_semantics<parallel>], iteration_bounds = array<i64: 1>, scalar_prefetch = 0 : i64, scratch_operands = 0 : i64, tpu.core_type = #tpu.core_type<tc>, window_params = [{transform_indices = @transform_0, window_bounds = array<i64: 16, 256>}, {transform_indices = @transform_1, window_bounds = array<i64: 16, 256>}]} {
    %c0 = arith.constant 0 : index
    %c0_0 = arith.constant 0 : index
    %0 = vector.load %arg1[%c0, %c0_0] : memref<16x256xf32, #tpu.memory_space<vmem>>, vector<16x128xf32>
    %c0_1 = arith.constant 0 : index
    %c128 = arith.constant 128 : index
    %1 = vector.load %arg1[%c0_1, %c128] : memref<16x256xf32, #tpu.memory_space<vmem>>, vector<16x128xf32>
    %cst = arith.constant 0.000000e+00 : f32
    %2 = vector.broadcast %cst : f32 to vector<16x128xf32>
    %3 = arith.maximumf %1, %2 : vector<16x128xf32>
    %4 = math.absf %1 : vector<16x128xf32>
    %cst_2 = arith.constant 0.000000e+00 : f32
    %5 = vector.broadcast %cst_2 : f32 to vector<16x128xf32>
    %6 = arith.subf %5, %4 : vector<16x128xf32>
    %7 = math.exp %6 : vector<16x128xf32>
    %8 = math.log1p %7 : vector<16x128xf32>
    %9 = arith.addf %3, %8 : vector<16x128xf32>
    %c0_3 = arith.constant 0 : index
    %c0_4 = arith.constant 0 : index
    %10 = vector.load %arg2[%c0_3, %c0_4] : memref<16x256xf32, #tpu.memory_space<vmem>>, vector<16x128xf32>
    tpu.vector_store %arg2[%c0_3, %c0_4], %0 {strides = array<i32>} : memref<16x256xf32, #tpu.memory_space<vmem>>, vector<16x128xf32>,
    %11 = arith.addf %0, %9 : vector<16x128xf32>
    %c0_5 = arith.constant 0 : index
    %c128_6 = arith.constant 128 : index
    %12 = vector.load %arg2[%c0_5, %c128_6] : memref<16x256xf32, #tpu.memory_space<vmem>>, vector<16x128xf32>
    tpu.vector_store %arg2[%c0_5, %c128_6], %11 {strides = array<i32>} : memref<16x256xf32, #tpu.memory_space<vmem>>, vector<16x128xf32>,
    return
  }
  func.func @transform_0(%arg0: i32) -> (i32, i32) {
    %c0_i32 = arith.constant 0 : i32
    %c0_i32_0 = arith.constant 0 : i32
    return %arg0, %c0_i32 : i32, i32
  }
  func.func @transform_1(%arg0: i32) -> (i32, i32) {
    %c0_i32 = arith.constant 0 : i32
    %c0_i32_0 = arith.constant 0 : i32
    return %arg0, %c0_i32 : i32, i32
  }
}

</mosaic_0001>

<llo_original>
// kernel: tpu_custom_call.1
$region0: #{tpu_custom_call.1}
  #allocation0 [shape = 'u32[]', space=smem, size = 0x4, offset = 0x4, fixed_abs, tag = 'smem constant byte address 0x4 - core index']
  #allocation1 [shape = 'u32[144,128]{1,0:T(1,128)}', space=vmem, size = 0x12000, scoped, tag = 'internal scratch']
  %s0 = inlined_call_operand.hbm [shape: f32[16,256], index: 0, kind: input, shape index: {}]
  %s1 = inlined_call_operand.hbm [shape: f32[16,256], index: 1, kind: output, shape index: {}]
  %s2 = sld [smem:[#allocation0]]
  $region18: #{tpu_custom_call.1} parent=0
    _
  %s4 = ssub.s32 1, %s2
  %s5 = scalar_select 0, %s4, %s2
  $region1: #{tpu_custom_call.1} parent=0
    #allocation2 [shape = 'u8[16384]{0}', space=vmem, size = 0x4000, scoped, tag = 'input window, operand 0, single buffered']
    #allocation3 [shape = 's32[1]{0}', space=sflag, size = 0x4, scoped, tag = 'scoped memory for tpu_custom_call.1']
    #allocation4 [shape = 's32[1]{0}', space=sflag, size = 0x4, scoped, tag = 'scoped memory for tpu_custom_call.1']
    #allocation5 [shape = 'u8[16384]{0}', space=vmem, size = 0x4000, scoped, tag = 'output window, operand 0, single buffered']
    %6 = vsyncpa [#allocation3], 0
    %7 = vsyncpa [#allocation4], 0
    // Predicated region
    $region2: #{tpu_custom_call.1} parent=1 // pred_check
      _
    $region3: #{tpu_custom_call.1} parent=1 // pred_check_branch
      %9 = sbr.rel (0) target = $region5
    $region4: #{tpu_custom_call.1} parent=1 // pred_region
      %s11 = ssub.s32 512, 512
      %12 = vsyncadd [#allocation3], %s11
      %s13 = sshll.u32 [#allocation2], 4
      %s14 = int_to_ptr.vmem [resolvable:$true] %s13
      %19 = dma.hbm_to_vmem [thread:$0]  %s0, 512, %s14, [#allocation3], 256, 256, 16
    $region5: #{tpu_custom_call.1} parent=1 // pred_fallthru
      _
    // Predicated region
    $region6: #{tpu_custom_call.1} parent=1 // pred_check
      _
    $region7: #{tpu_custom_call.1} parent=1 // pred_check_branch
      %21 = sbr.rel (0) target = $region9
    $region8: #{tpu_custom_call.1} parent=1 // pred_region
      %22 = dma.done [#allocation3], 512
    $region9: #{tpu_custom_call.1} parent=1 // pred_fallthru
      _
    %v23 = vld [vmem:[#allocation2] sm:$0xff]
    %v24 = vld [vmem:[#allocation2 + $0x10] sm:$0xff]
    %v25 = vld [vmem:[#allocation2 + $0x8] sm:$0xff]
    %v26 = vld [vmem:[#allocation2 + $0x18] sm:$0xff]
    %v27 = vmax.f32 %v25, 0.0
    %v28 = vmax.f32 %v26, 0.0
    %v29 = vand.u32 2147483647, %v25
    %v30 = vand.u32 2147483647, %v26
    %v31 = vsub.f32 0.0, %v29
    %v32 = vsub.f32 0.0, %v30
    %v33 = vmul.f32 %v31, 1.442695
    %v34 = vpow.pop %v33
    %v35 = vmul.f32 %v32, 1.442695
    %v36 = vpow.pop %v35
    %v37 = vadd.f32 %v34, 1.0
    %v38 = vlog2.pop %v37
    %v39 = vmul.f32 %v38, 0.6931472
    %v40 = vmul.f32 -0.5, %v34
    %v41 = vadd.f32 %v40, 1.0
    %v42 = vmul.f32 %v41, %v34
    %v43 = vand.u32 2147483647, %v34
    %vm44 = vcmp.lt.f32.partialorder %v43, 0.0004427343
    %v45 = vsel %vm44, %v42, %v39
    %v46 = vadd.f32 %v36, 1.0
    %v47 = vlog2.pop %v46
    %v48 = vmul.f32 %v47, 0.6931472
    %v49 = vmul.f32 -0.5, %v36
    %v50 = vadd.f32 %v49, 1.0
    %v51 = vmul.f32 %v50, %v36
    %v52 = vand.u32 2147483647, %v36
    %vm53 = vcmp.lt.f32.partialorder %v52, 0.0004427343
    %v54 = vsel %vm53, %v51, %v48
    %v55 = vadd.f32 %v27, %v45
    %v56 = vadd.f32 %v28, %v54
    %57 = vst [vmem:[#allocation5] sm:$0xff] %v23
    %58 = vst [vmem:[#allocation5 + $0x10] sm:$0xff] %v24
    %v59 = vadd.f32 %v23, %v55
    %v60 = vadd.f32 %v24, %v56
    %61 = vst [vmem:[#allocation5 + $0x8] sm:$0xff] %v59
    %62 = vst [vmem:[#allocation5 + $0x18] sm:$0xff] %v60
    // Predicated region
    $region10: #{tpu_custom_call.1} parent=1 // pred_check
      _
    $region11: #{tpu_custom_call.1} parent=1 // pred_check_branch
      %64 = sbr.rel (0) target = $region13
    $region12: #{tpu_custom_call.1} parent=1 // pred_region
      %s66 = ssub.s32 512, 512
      %67 = vsyncadd [#allocation4], %s66
      %s68 = sshll.u32 [#allocation5], 4
      %s69 = int_to_ptr.vmem [resolvable:$true] %s68
      %74 = dma.vmem_to_hbm [thread:$0]  %s69, 512, %s1, [#allocation4], 256, 256, 16
    $region13: #{tpu_custom_call.1} parent=1 // pred_fallthru
      _
    // Predicated region
    $region14: #{tpu_custom_call.1} parent=1 // pred_check
      _
    $region15: #{tpu_custom_call.1} parent=1 // pred_check_branch
      %76 = sbr.rel (0) target = $region17
    $region16: #{tpu_custom_call.1} parent=1 // pred_region
      %77 = dma.done [#allocation4], 512
    $region17: #{tpu_custom_call.1} parent=1 // pred_fallthru
      _
    %78 = vsyncpa [#allocation3], 1
    %79 = vsyncpa [#allocation4], 1

</llo_original>
